<compile_context>
chip_gen: v5e
topology: v5e:2x2
jax: 0.10.0
libtpu: 0.0.40
codegen_flags: <defaults>
</compile_context>

<pallas_src>
import jax
import jax.numpy as jnp
from jax.experimental import pallas as pl
from jax.experimental.pallas import tpu as pltpu


def _round_up(x, m):
    return ((x + m - 1) // m) * m


def generator_kernel(x_ref, w1_ref, b1_ref, w2_ref, b2_ref, o_ref):
    """Fused 2-layer MLP tile:
         h = LeakyReLU_0.2(x @ W1 + b1);   y = ReLU(h @ W2[:, f-tile] + b2[f-tile])
       bf16 MXU operands, f32 accumulation; elementwise math in f32."""
    x = x_ref[...].astype(jnp.bfloat16)                                 # (tm, Kp)
    h = jnp.dot(x, w1_ref[...], preferred_element_type=jnp.float32) + b1_ref[...]
    h = jnp.maximum(h, 0.2 * h)                                         # LeakyReLU(0.2), exact
    y = jnp.dot(h.astype(jnp.bfloat16), w2_ref[...],
                preferred_element_type=jnp.float32) + b2_ref[...]
    o_ref[...] = jnp.maximum(y, 0.0).astype(o_ref.dtype)                # ReLU


def prepare_generator_params(w1, b1, w2, b2):
    """One-time weight preparation (call ONCE, keep the result as the params):
       * zero-pad W1's input dim (latent+class) up to a multiple of 128 so layer 1
         is a single MXU-aligned-K matmul (padded rows are zero -> exact),
       * cast weights to bf16 (MXU-native, halves weight HBM/VMEM traffic),
       * keep biases in f32, reshaped to (1, N) for lane-major broadcast."""
    din, hidden = w1.shape
    h2, feat = w2.shape
    assert h2 == hidden, "w2 must be (hidden, feature)"
    kp = _round_up(din, 128)
    w1p = jnp.pad(w1.astype(jnp.bfloat16), ((0, kp - din), (0, 0)))     # (Kp, H)
    return {
        "din": din,
        "w1": w1p,                                                      # (Kp, H)  bf16
        "b1": b1.reshape(1, hidden).astype(jnp.float32),                # (1, H)   f32
        "w2": w2.astype(jnp.bfloat16),                                  # (H, F)   bf16
        "b2": b2.reshape(1, feat).astype(jnp.float32),                  # (1, F)   f32
    }


def generator_forward(noise, class_embed, params, *, tm=None, nf=None,
                      out_dtype=jnp.float32):
    """Fused Pallas MLP forward. `params` must come from prepare_generator_params."""
    B, L = noise.shape
    Bc, C = class_embed.shape
    assert Bc == B
    w1, b1, w2, b2 = params["w1"], params["b1"], params["w2"], params["b2"]
    Kp, H = w1.shape
    _, F = w2.shape
    assert params["din"] == L + C, "params prepared for a different latent/class split"

    # Concat + zero-pad the (tiny) input to the padded K; padded W1 rows are zero,
    # so the result is exact and layer 1 is one aligned-K MXU pass.
    x = jnp.concatenate([noise, class_embed], axis=-1)
    if Kp != L + C:
        x = jnp.pad(x, ((0, 0), (0, Kp - (L + C))))

    # Batch tile: 256 fills the 256-tall MXU M-dim and keeps per-grid-step overhead
    # negligible; weights are resident so a bigger tm adds no HBM traffic.
    if tm is None:
        tm = min(B, 256)
    tm = min(tm, B)
    nb = pl.cdiv(B, tm)

    # Output-feature tiling: F is the OUTER "parallel" grid axis, batch stays serial.
    # On v7x each TensorCore then owns a disjoint half of W2 (no duplicated weight
    # fetch); on v5e/v6e nf just splits W2 with no extra HBM traffic.
    if nf is None:
        nf = 2 if (F >= 256 and F % 256 == 0) else 1
    assert F % nf == 0 and (F // nf) % 128 == 0, "F tile must be a multiple of 128 lanes"
    tn = F // nf

    cost = pl.CostEstimate(
        flops=2 * B * (nf * Kp * H + H * F),
        transcendentals=0,
        bytes_accessed=(x.size * 4 + (w1.size + w2.size) * 2
                        + (H + F) * 4 + B * F * jnp.dtype(out_dtype).itemsize),
    )

    # VMEM estimate: x double-buffered, weights single-buffered, out double-buffered,
    # plus the f32 (tm, H) activation. Fits comfortably under v7x's 64 MiB even at
    # production H=4096 / F=2048.
    vmem_est = (2 * tm * Kp * 4 + Kp * H * 2 + H * 4 + H * tn * 2 + tn * 4
                + 2 * tm * tn * jnp.dtype(out_dtype).itemsize + tm * H * 4)
    vmem_limit = int(min(56 * 1024 * 1024, max(32 * 1024 * 1024, 2 * vmem_est)))

    resident = pl.Buffered(1)   # single-buffer constant / slow-varying operands

    out = pl.pallas_call(
        generator_kernel,
        out_shape=jax.ShapeDtypeStruct((B, F), out_dtype),
        grid_spec=pltpu.PrefetchScalarGridSpec(
            num_scalar_prefetch=0,
            grid=(nf, nb),                                          # F outer, batch inner
            in_specs=[
                pl.BlockSpec((tm, Kp), lambda f, b: (b, 0)),        # x batch tile
                pl.BlockSpec((Kp, H), lambda f, b: (0, 0), pipeline_mode=resident),  # W1
                pl.BlockSpec((1, H), lambda f, b: (0, 0), pipeline_mode=resident),   # b1
                pl.BlockSpec((H, tn), lambda f, b: (0, f), pipeline_mode=resident),  # W2 F-tile
                pl.BlockSpec((1, tn), lambda f, b: (0, f), pipeline_mode=resident),  # b2 F-tile
            ],
            out_specs=pl.BlockSpec((tm, tn), lambda f, b: (b, f)),
        ),
        compiler_params=pltpu.CompilerParams(
            dimension_semantics=("parallel", "arbitrary"),          # F -> v7x megacore
            vmem_limit_bytes=vmem_limit,
        ),
        cost_estimate=cost,
    )(x, w1, b1, w2, b2)
    # .view(B, -1) is a no-op here (output already (B, feature)).
    return out


def init_linear(key, in_feat, out_feat):
    """Deterministic init mimicking torch.nn.Linear default (U(-k, k), k=1/sqrt(in))."""
    kw, kb = jax.random.split(key)
    k = 1.0 / jnp.sqrt(jnp.float32(in_feat))
    w = jax.random.uniform(kw, (in_feat, out_feat), jnp.float32, -k, k)
    b = jax.random.uniform(kb, (out_feat,), jnp.float32, -k, k)
    return w, b


if __name__ == "__main__":
    # Small shapes consistent with the module (latent_dim=85; hidden/feature scaled down).
    B = 256
    LATENT = 85        # latent_dim in the original module
    CLASS = 32         # class_dim (constructor argument)
    HIDDEN = 256       # small stand-in for generator_hidden_size = 4096
    FEATURE = 256      # small stand-in for feature_dim = 2048 (exercises the F-tiled path)

    root = jax.random.PRNGKey(0)
    k_noise, k_class, k_l1, k_l2 = jax.random.split(root, 4)

    noise = jax.random.normal(k_noise, (B, LATENT), jnp.float32)
    class_embed = jax.random.normal(k_class, (B, CLASS), jnp.float32)

    w1, b1 = init_linear(k_l1, LATENT + CLASS, HIDDEN)
    w2, b2 = init_linear(k_l2, HIDDEN, FEATURE)

    # One-time weight prep (bf16 cast + K padding) kept OUT of the per-call path.
    params = prepare_generator_params(w1, b1, w2, b2)

    out = jax.block_until_ready(generator_forward(noise, class_embed, params))
    assert out.shape == (B, FEATURE)

    # Reference #1: pure-JAX emulation of the kernel's bf16-operand / f32-accumulate math.
    x = jnp.concatenate([noise, class_embed], axis=-1)
    h = jnp.dot(x.astype(jnp.bfloat16), w1.astype(jnp.bfloat16),
                preferred_element_type=jnp.float32) + b1
    h = jnp.maximum(h, 0.2 * h)
    ref_bf16 = jnp.maximum(
        jnp.dot(h.astype(jnp.bfloat16), w2.astype(jnp.bfloat16),
                preferred_element_type=jnp.float32) + b2, 0.0)
    assert float(jnp.max(jnp.abs(out - ref_bf16))) < 1e-3

    # Reference #2: full-f32 torch-equivalent math (loose tol: bf16 matmul operands).
    h32 = x @ w1 + b1
    h32 = jnp.where(h32 > 0, h32, 0.2 * h32)
    ref_f32 = jnp.maximum(h32 @ w2 + b2, 0.0)
    assert float(jnp.max(jnp.abs(out - ref_f32))) < 1e-1

    print("KERNEL_OK")
</pallas_src>

<mosaic_0001>
module attributes {stable_mosaic.version = 11 : i64} {
  func.func @generator_kernel(%arg0: i32, %arg1: i32, %arg2: memref<256x128xf32, #tpu.memory_space<vmem>>, %arg3: memref<128x256xbf16, #tpu.memory_space<vmem>>, %arg4: memref<1x256xf32, #tpu.memory_space<vmem>>, %arg5: memref<256x128xbf16, #tpu.memory_space<vmem>>, %arg6: memref<1x128xf32, #tpu.memory_space<vmem>>, %arg7: memref<256x128xf32, #tpu.memory_space<vmem>>) attributes {dimension_semantics = [#tpu.dimension_semantics<parallel>, #tpu.dimension_semantics<arbitrary>], iteration_bounds = array<i64: 2, 1>, scalar_prefetch = 0 : i64, scratch_operands = 0 : i64, tpu.core_type = #tpu.core_type<tc>, window_params = [{transform_indices = @transform_0, window_bounds = array<i64: 256, 128>}, {pipeline_mode = #tpu.pipeline_mode<synchronous>, transform_indices = @transform_1, window_bounds = array<i64: 128, 256>}, {pipeline_mode = #tpu.pipeline_mode<synchronous>, transform_indices = @transform_2, window_bounds = array<i64: 1, 256>}, {pipeline_mode = #tpu.pipeline_mode<synchronous>, transform_indices = @transform_3, window_bounds = array<i64: 256, 128>}, {pipeline_mode = #tpu.pipeline_mode<synchronous>, transform_indices = @transform_4, window_bounds = array<i64: 1, 128>}, {transform_indices = @transform_5, window_bounds = array<i64: 256, 128>}]} {
    %c0 = arith.constant 0 : index
    %c0_0 = arith.constant 0 : index
    %0 = vector.load %arg2[%c0, %c0_0] : memref<256x128xf32, #tpu.memory_space<vmem>>, vector<256x128xf32>
    %1 = arith.truncf %0 : vector<256x128xf32> to vector<256x128xbf16>
    %c0_1 = arith.constant 0 : index
    %c0_2 = arith.constant 0 : index
    %2 = vector.load %arg3[%c0_1, %c0_2] : memref<128x256xbf16, #tpu.memory_space<vmem>>, vector<128x256xbf16>
    %cst = arith.constant dense<0.000000e+00> : vector<256x256xf32>
    %3 = tpu.matmul %1, %2, %cst {dimension_numbers = #tpu.dot_dimension_numbers<[1], [0], [0], [1], [0, 0, 1, 1], [], []>} : vector<256x128xbf16>, vector<128x256xbf16>, vector<256x256xf32> -> vector<256x256xf32>
    %c0_3 = arith.constant 0 : index
    %c0_4 = arith.constant 0 : index
    %4 = vector.load %arg4[%c0_3, %c0_4] : memref<1x256xf32, #tpu.memory_space<vmem>>, vector<1x256xf32>
    %5 = vector.broadcast %4 : vector<1x256xf32> to vector<256x256xf32>
    %6 = arith.addf %3, %5 : vector<256x256xf32>
    %cst_5 = arith.constant 2.000000e-01 : f32
    %7 = vector.broadcast %cst_5 : f32 to vector<256x256xf32>
    %8 = arith.mulf %7, %6 : vector<256x256xf32>
    %9 = arith.maximumf %6, %8 : vector<256x256xf32>
    %10 = arith.truncf %9 : vector<256x256xf32> to vector<256x256xbf16>
    %c0_6 = arith.constant 0 : index
    %c0_7 = arith.constant 0 : index
    %11 = vector.load %arg5[%c0_6, %c0_7] : memref<256x128xbf16, #tpu.memory_space<vmem>>, vector<256x128xbf16>
    %cst_8 = arith.constant dense<0.000000e+00> : vector<256x128xf32>
    %12 = tpu.matmul %10, %11, %cst_8 {dimension_numbers = #tpu.dot_dimension_numbers<[1], [0], [0], [1], [0, 0, 1, 1], [], []>} : vector<256x256xbf16>, vector<256x128xbf16>, vector<256x128xf32> -> vector<256x128xf32>
    %c0_9 = arith.constant 0 : index
    %c0_10 = arith.constant 0 : index
    %13 = vector.load %arg6[%c0_9, %c0_10] : memref<1x128xf32, #tpu.memory_space<vmem>>, vector<1x128xf32>
    %14 = vector.broadcast %13 : vector<1x128xf32> to vector<256x128xf32>
    %15 = arith.addf %12, %14 : vector<256x128xf32>
    %cst_11 = arith.constant 0.000000e+00 : f32
    %16 = vector.broadcast %cst_11 : f32 to vector<256x128xf32>
    %17 = arith.maximumf %15, %16 : vector<256x128xf32>
    %c0_12 = arith.constant 0 : index
    %c0_13 = arith.constant 0 : index
    %18 = vector.load %arg7[%c0_12, %c0_13] : memref<256x128xf32, #tpu.memory_space<vmem>>, vector<256x128xf32>
    tpu.vector_store %arg7[%c0_12, %c0_13], %17 {strides = array<i32>} : memref<256x128xf32, #tpu.memory_space<vmem>>, vector<256x128xf32>,
    return
  }
  func.func @transform_0(%arg0: i32, %arg1: i32) -> (i32, i32) {
    %c0_i32 = arith.constant 0 : i32
    %c0_i32_0 = arith.constant 0 : i32
    return %arg1, %c0_i32 : i32, i32
  }
  func.func @transform_1(%arg0: i32, %arg1: i32) -> (i32, i32) {
    %c0_i32 = arith.constant 0 : i32
    %c0_i32_0 = arith.constant 0 : i32
    %c0_i32_1 = arith.constant 0 : i32
    return %c0_i32, %c0_i32_0 : i32, i32
  }
  func.func @transform_2(%arg0: i32, %arg1: i32) -> (i32, i32) {
    %c0_i32 = arith.constant 0 : i32
    %c0_i32_0 = arith.constant 0 : i32
    %c0_i32_1 = arith.constant 0 : i32
    return %c0_i32, %c0_i32_0 : i32, i32
  }
  func.func @transform_3(%arg0: i32, %arg1: i32) -> (i32, i32) {
    %c0_i32 = arith.constant 0 : i32
    %c0_i32_0 = arith.constant 0 : i32
    return %c0_i32, %arg0 : i32, i32
  }
  func.func @transform_4(%arg0: i32, %arg1: i32) -> (i32, i32) {
    %c0_i32 = arith.constant 0 : i32
    %c0_i32_0 = arith.constant 0 : i32
    return %c0_i32, %arg0 : i32, i32
  }
  func.func @transform_5(%arg0: i32, %arg1: i32) -> (i32, i32) {
    %c0_i32 = arith.constant 0 : i32
    return %arg1, %arg0 : i32, i32
  }
}

</mosaic_0001>

<llo_original>
// kernel: tpu_custom_call.1
$region0: #{tpu_custom_call.1}
  #allocation0 [shape = 'u32[]', space=smem, size = 0x4, offset = 0x4, fixed_abs, tag = 'smem constant byte address 0x4 - core index']
  #allocation1 [shape = 'u32[72,128]{1,0:T(1,128)}', space=vmem, size = 0x9000, scoped, tag = 'internal scratch']
  %s0 = inlined_call_operand.hbm [shape: f32[256,128], index: 0, kind: input, shape index: {}]
  %s1 = inlined_call_operand.hbm [shape: bf16[128,256], index: 1, kind: input, shape index: {}]
  %s2 = inlined_call_operand.hbm [shape: f32[1,256], index: 2, kind: input, shape index: {}]
  %s3 = inlined_call_operand.hbm [shape: bf16[256,256], index: 3, kind: input, shape index: {}]
  %s4 = inlined_call_operand.vmem [shape: f32[1,256], index: 4, kind: input, shape index: {}]
  %s5 = inlined_call_operand.hbm [shape: f32[256,256], index: 5, kind: output, shape index: {}]
  %s6 = sld [smem:[#allocation0]]
  $region69: #{tpu_custom_call.1} parent=0
    _
  %s8 = ssub.s32 1, %s6
  %s9 = scalar_select 0, %s8, %s6
  $region1: #{tpu_custom_call.1} parent=0
    #allocation2 [shape = 'u8[131072]{0}', space=vmem, size = 0x20000, scoped, tag = 'input window, operand 0, single buffered']
    #allocation3 [shape = 's32[2]{0}', space=sflag, size = 0x8, scoped, tag = 'scoped memory for tpu_custom_call.1']
    #allocation4 [shape = 's32[2]{0}', space=sflag, size = 0x8, scoped, tag = 'scoped memory for tpu_custom_call.1']
    #allocation5 [shape = 'u8[65536]{0}', space=vmem, size = 0x10000, scoped, tag = 'input window, operand 1, single buffered']
    #allocation6 [shape = 's32[1]{0}', space=sflag, size = 0x4, scoped, tag = 'scoped memory for tpu_custom_call.1']
    #allocation7 [shape = 'u8[1024]{0}', space=vmem, size = 0x400, scoped, tag = 'input window, operand 2, single buffered']
    #allocation8 [shape = 'u8[65536]{0}', space=vmem, size = 0x10000, scoped, tag = 'input window, operand 3, single buffered']
    #allocation9 [shape = 's32[1]{0}', space=sflag, size = 0x4, scoped, tag = 'scoped memory for tpu_custom_call.1']
    #allocation10 [shape = 'u8[262144]{0}', space=vmem, size = 0x40000, scoped, tag = 'output window, operand 0']
    %10 = vsyncpa [#allocation3], 0
    %11 = vsyncpa [#allocation6], 0
    %12 = vsyncpa [#allocation9], 0
    %13 = vsyncpa [#allocation4], 0
    %s14 = scalar_lea.sflag [#allocation4], 1
    %15 = vsyncpa %s14, 0
    loop: start=0, step=1, limit=4
    $region2: #{tpu_custom_call.1} parent=1 // loop_pre_header
      _
    $region3: #{tpu_custom_call.1} parent=1 // loop_header
      %s17 = sphi 0, %s21
      %p18 = scmp.ge.s32.totalorder %s17, 4
      %s24 = sphi 0, %s36
      %s25 = sphi 0, %s32
      %s26 = sphi 0, %s24
      %s27 = sphi 0, %s25
      %s28 = sphi 0, %s26
      %s29 = sphi 0, %s27
      %s39 = sphi 0, %s41
      %s42 = sphi 0, %s39
      %s43 = sphi 0, %s42
      %s59 = sphi 0, %s43
      %s63 = sphi 0, %s63
      %s65 = sphi 0, %s63
      %s66 = sphi 0, %s65
      %s80 = sphi 0, %s66
      %s84 = sphi 0, %s84
      %s86 = sphi 0, %s84
      %s87 = sphi 0, %s86
      %s101 = sphi 0, %s87
      %s107 = sphi 0, %s109
      %s110 = sphi 0, %s107
      %s111 = sphi 0, %s110
      %s127 = sphi 0, %s111
      %s133 = sphi 0, %s135
      %s136 = sphi 0, %s133
      %s137 = sphi 0, %s136
      %s153 = sphi 0, %s137
      %s161 = sphi 0, %s163
      %s164 = sphi 0, %s161
      %s165 = sphi 0, %s164
      %s181 = sphi 0, %s165
    $region4: #{tpu_custom_call.1} parent=1 // loop_header_branch
      %20 = sbr.rel (%p18) target = $region8
    $region5: #{tpu_custom_call.1} parent=1 // loop_body
      %s22 = ssub.s32 %s17, 1
      %s23 = ssub.s32 %s17, 2
      %s30 = sadd.s32 1, %s25
      %p31 = scmp.ge.s32.totalorder %s30, 1
      %s32 = scalar_select %p31, 0, %s30
      %s33 = sadd.s32 1, %s24
      %s34 = scalar_select %p31, %s33, %s24
      %p35 = scmp.ge.s32.totalorder %s34, 2
      %s36 = scalar_select %p35, 0, %s34
      %s37 = ssub.s32 %s25, %s32
      %p38 = scmp.eq.s32.totalorder %s37, 0
      %s40 = sadd.s32 %s39, 1
      %s41 = scalar_select %p38, %s39, %s40
      %p44 = pneg %p38
      %p45 = scmp.eq.s32.totalorder %s17, 1
      %p46 = por %p44, %p45
      %p47 = scmp.ne.s32.totalorder %s39, %s42
      %p48 = scmp.eq.s32.totalorder %s17, 0
      %p49 = por %p47, %p48
      %p50 = scmp.ne.s32.totalorder %s39, %s42
      %p51 = scmp.eq.s32.totalorder %s22, 1
      %p52 = por %p50, %p51
      %p53 = scmp.ne.s32.totalorder %s42, %s43
      %p54 = scmp.eq.s32.totalorder %s22, 0
      %p55 = por %p53, %p54
      %p56 = scmp.ne.s32.totalorder %s42, %s43
      %p57 = scmp.eq.s32.totalorder %s23, 1
      %p58 = por %p56, %p57
      %p60 = scmp.ne.s32.totalorder %s43, %s59
      %p61 = scmp.eq.s32.totalorder %s23, 0
      %p62 = por %p60, %p61
      %s64 = sadd.s32 %s63, 1
      %p67 = scmp.eq.s32.totalorder %s17, 1
      %p68 = scmp.ne.s32.totalorder %s63, %s65
      %p69 = scmp.eq.s32.totalorder %s17, 0
      %p70 = por %p68, %p69
      %p71 = scmp.ne.s32.totalorder %s63, %s65
      %p72 = scmp.eq.s32.totalorder %s22, 1
      %p73 = por %p71, %p72
      %p74 = scmp.ne.s32.totalorder %s65, %s66
      %p75 = scmp.eq.s32.totalorder %s22, 0
      %p76 = por %p74, %p75
      %p77 = scmp.ne.s32.totalorder %s65, %s66
      %p78 = scmp.eq.s32.totalorder %s23, 1
      %p79 = por %p77, %p78
      %p81 = scmp.ne.s32.totalorder %s66, %s80
      %p82 = scmp.eq.s32.totalorder %s23, 0
      %p83 = por %p81, %p82
      %s85 = sadd.s32 %s84, 1
      %p88 = scmp.eq.s32.totalorder %s17, 1
      %p89 = scmp.ne.s32.totalorder %s84, %s86
      %p90 = scmp.eq.s32.totalorder %s17, 0
      %p91 = por %p89, %p90
      %p92 = scmp.ne.s32.totalorder %s84, %s86
      %p93 = scmp.eq.s32.totalorder %s22, 1
      %p94 = por %p92, %p93
      %p95 = scmp.ne.s32.totalorder %s86, %s87
      %p96 = scmp.eq.s32.totalorder %s22, 0
      %p97 = por %p95, %p96
      %p98 = scmp.ne.s32.totalorder %s86, %s87
      %p99 = scmp.eq.s32.totalorder %s23, 1
      %p100 = por %p98, %p99
      %p102 = scmp.ne.s32.totalorder %s87, %s101
      %p103 = scmp.eq.s32.totalorder %s23, 0
      %p104 = por %p102, %p103
      %s105 = ssub.s32 %s24, %s36
      %p106 = scmp.eq.s32.totalorder %s105, 0
      %s108 = sadd.s32 %s107, 1
      %s109 = scalar_select %p106, %s107, %s108
      %p112 = pneg %p106
      %p113 = scmp.eq.s32.totalorder %s17, 1
      %p114 = por %p112, %p113
      %p115 = scmp.ne.s32.totalorder %s107, %s110
      %p116 = scmp.eq.s32.totalorder %s17, 0
      %p117 = por %p115, %p116
      %p118 = scmp.ne.s32.totalorder %s107, %s110
      %p119 = scmp.eq.s32.totalorder %s22, 1
      %p120 = por %p118, %p119
      %p121 = scmp.ne.s32.totalorder %s110, %s111
      %p122 = scmp.eq.s32.totalorder %s22, 0
      %p123 = por %p121, %p122
      %p124 = scmp.ne.s32.totalorder %s110, %s111
      %p125 = scmp.eq.s32.totalorder %s23, 1
      %p126 = por %p124, %p125
      %p128 = scmp.ne.s32.totalorder %s111, %s127
      %p129 = scmp.eq.s32.totalorder %s23, 0
      %p130 = por %p128, %p129
      %s131 = ssub.s32 %s24, %s36
      %p132 = scmp.eq.s32.totalorder %s131, 0
      %s134 = sadd.s32 %s133, 1
      %s135 = scalar_select %p132, %s133, %s134
      %p138 = pneg %p132
      %p139 = scmp.eq.s32.totalorder %s17, 1
      %p140 = por %p138, %p139
      %p141 = scmp.ne.s32.totalorder %s133, %s136
      %p142 = scmp.eq.s32.totalorder %s17, 0
      %p143 = por %p141, %p142
      %p144 = scmp.ne.s32.totalorder %s133, %s136
      %p145 = scmp.eq.s32.totalorder %s22, 1
      %p146 = por %p144, %p145
      %p147 = scmp.ne.s32.totalorder %s136, %s137
      %p148 = scmp.eq.s32.totalorder %s22, 0
      %p149 = por %p147, %p148
      %p150 = scmp.ne.s32.totalorder %s136, %s137
      %p151 = scmp.eq.s32.totalorder %s23, 1
      %p152 = por %p150, %p151
      %p154 = scmp.ne.s32.totalorder %s137, %s153
      %p155 = scmp.eq.s32.totalorder %s23, 0
      %p156 = por %p154, %p155
      %s157 = ssub.s32 %s25, %s32
      %s158 = ssub.s32 %s24, %s36
      %s159 = sor.u32 %s157, %s158
      %p160 = scmp.eq.s32.totalorder %s159, 0
      %s162 = sadd.s32 %s161, 1
      %s163 = scalar_select %p160, %s161, %s162
      %p166 = pneg %p160
      %p167 = scmp.eq.s32.totalorder %s17, 1
      %p168 = por %p166, %p167
      %p169 = scmp.ne.s32.totalorder %s161, %s164
      %p170 = scmp.eq.s32.totalorder %s17, 0
      %p171 = por %p169, %p170
      %p172 = scmp.ne.s32.totalorder %s161, %s164
      %p173 = scmp.eq.s32.totalorder %s22, 1
      %p174 = por %p172, %p173
      %p175 = scmp.ne.s32.totalorder %s164, %s165
      %p176 = scmp.eq.s32.totalorder %s22, 0
      %p177 = por %p175, %p176
      %p178 = scmp.ne.s32.totalorder %s164, %s165
      %p179 = scmp.eq.s32.totalorder %s23, 1
      %p180 = por %p178, %p179
      %p182 = scmp.ne.s32.totalorder %s165, %s181
      %p183 = scmp.eq.s32.totalorder %s23, 0
      %p184 = por %p182, %p183
      %p185 = scmp.le.s32.totalorder 1, %s17
      %p186 = scmp.lt.s32.totalorder %s17, 3
      %p187 = pnand %p185, %p186
      %p188 = pneg %p187
      // Predicated region
      $region9: #{tpu_custom_call.1} parent=5 // pred_check
        _
      $region10: #{tpu_custom_call.1} parent=5 // pred_check_branch
        %190 = sbr.rel (%p187) target = $region12
      $region11: #{tpu_custom_call.1} parent=5 // pred_region
        %s191 = ssub.s32 %s17, 1
        // Predicated region
        $region13: #{tpu_custom_call.1} parent=11 // pred_check
          %p192 = pneg %p55
        $region14: #{tpu_custom_call.1} parent=11 // pred_check_branch
          %194 = sbr.rel (%p192) target = $region16
        $region15: #{tpu_custom_call.1} parent=11 // pred_region
          %s195 = smul.u32 32, %s27
          %197 = vsyncadd [#allocation3], 0
          %s198 = smul.addr %s195, 8
          %s199 = scalar_lea.hbm %s0, %s198
          %s200 = sshll.u32 %s199, 4
          %s201 = int_to_ptr.hbm [resolvable:$true] %s200
          %s202 = sshll.u32 [#allocation2], 4
          %s203 = int_to_ptr.vmem [resolvable:$true] %s202
          %208 = dma.hbm_to_vmem [thread:$0]  %s201, 4096, %s203, [#allocation3], 128, 128, 8
        $region16: #{tpu_custom_call.1} parent=11 // pred_fallthru
          _
        // Predicated region
        $region17: #{tpu_custom_call.1} parent=11 // pred_check
          %p209 = pneg %p76
        $region18: #{tpu_custom_call.1} parent=11 // pred_check_branch
          %211 = sbr.rel (%p209) target = $region20
        $region19: #{tpu_custom_call.1} parent=11 // pred_region
          %213 = vsyncadd [#allocation6], 0
          %s214 = sshll.u32 %s1, 4
          %s215 = int_to_ptr.hbm [resolvable:$true] %s214
          %s216 = sshll.u32 [#allocation5], 4
          %s217 = int_to_ptr.vmem [resolvable:$true] %s216
          %222 = dma.hbm_to_vmem [thread:$0]  %s215, 2048, %s217, [#allocation6], 128, 128, 8
        $region20: #{tpu_custom_call.1} parent=11 // pred_fallthru
          _
        // Predicated region
        $region21: #{tpu_custom_call.1} parent=11 // pred_check
          %p223 = pneg %p97
        $region22: #{tpu_custom_call.1} parent=11 // pred_check_branch
          %225 = sbr.rel (%p223) target = $region24
        $region23: #{tpu_custom_call.1} parent=11 // pred_region
          %227 = vsyncadd [#allocation6], 0
          %s229 = sshll.u32 %s2, 4
          %s230 = int_to_ptr.hbm [resolvable:$true] %s229
          %s231 = sshll.u32 [#allocation7], 4
          %s232 = int_to_ptr.vmem [resolvable:$true] %s231
          %234 = dma.hbm_to_vmem [thread:$0]  %s230, 32, %s232, [#allocation6]
        $region24: #{tpu_custom_call.1} parent=11 // pred_fallthru
          _
        // Predicated region
        $region25: #{tpu_custom_call.1} parent=11 // pred_check
          %p235 = pneg %p123
        $region26: #{tpu_custom_call.1} parent=11 // pred_check_branch
          %237 = sbr.rel (%p235) target = $region28
        $region27: #{tpu_custom_call.1} parent=11 // pred_region
          %239 = vsyncadd [#allocation9], 0
          %s240 = smul.addr %s26, 4
          %s241 = scalar_lea.hbm %s3, %s240
          %s242 = sshll.u32 %s241, 4
          %s243 = int_to_ptr.hbm [resolvable:$true] %s242
          %s244 = sshll.u32 [#allocation8], 4
          %s245 = int_to_ptr.vmem [resolvable:$true] %s244
          %250 = dma.hbm_to_vmem [thread:$0]  %s243, 2048, %s245, [#allocation9], 128, 64, 4
        $region28: #{tpu_custom_call.1} parent=11 // pred_fallthru
          _
        // Predicated region
        $region29: #{tpu_custom_call.1} parent=11 // pred_check
          %p251 = pneg %p149
        $region30: #{tpu_custom_call.1} parent=11 // pred_check_branch
          %253 = sbr.rel (%p251) target = $region32
        $region31: #{tpu_custom_call.1} parent=11 // pred_region
          %p254 = scmp.lt.s32.totalorder %s26, 1
          %s255 = scalar_select %p254, %s26, 1
          %s256 = scalar_lea.vmem %s4, %s255
        $region32: #{tpu_custom_call.1} parent=11 // pred_fallthru
          _
      $region12: #{tpu_custom_call.1} parent=5 // pred_fallthru
        _
      %p257 = scmp.lt.s32.totalorder %s17, 2
      // Predicated region
      $region33: #{tpu_custom_call.1} parent=5 // pred_check
        %p258 = pneg %p257
      $region34: #{tpu_custom_call.1} parent=5 // pred_check_branch
        %260 = sbr.rel (%p258) target = $region36
      $region35: #{tpu_custom_call.1} parent=5 // pred_region
        _
      $region36: #{tpu_custom_call.1} parent=5 // pred_fallthru
        _
      %p261 = scmp.le.s32.totalorder 1, %s17
      %p262 = scmp.lt.s32.totalorder %s17, 3
      %p263 = pnand %p261, %p262
      %p264 = pneg %p263
      // Predicated region
      $region37: #{tpu_custom_call.1} parent=5 // pred_check
        _
      $region38: #{tpu_custom_call.1} parent=5 // pred_check_branch
        %266 = sbr.rel (%p263) target = $region40
      $region39: #{tpu_custom_call.1} parent=5 // pred_region
        %s267 = ssub.s32 %s17, 1
        // Predicated region
        $region41: #{tpu_custom_call.1} parent=39 // pred_check
          %p268 = pneg %p55
        $region42: #{tpu_custom_call.1} parent=39 // pred_check_branch
          %270 = sbr.rel (%p268) target = $region44
        $region43: #{tpu_custom_call.1} parent=39 // pred_region
          %272 = dma.done [#allocation3], 4096
        $region44: #{tpu_custom_call.1} parent=39 // pred_fallthru
          _
        // Predicated region
        $region45: #{tpu_custom_call.1} parent=39 // pred_check
          %p273 = pneg %p76
        $region46: #{tpu_custom_call.1} parent=39 // pred_check_branch
          %275 = sbr.rel (%p273) target = $region48
        $region47: #{tpu_custom_call.1} parent=39 // pred_region
          %277 = dma.done [#allocation6], 2048
        $region48: #{tpu_custom_call.1} parent=39 // pred_fallthru
          _
        // Predicated region
        $region49: #{tpu_custom_call.1} parent=39 // pred_check
          %p278 = pneg %p97
        $region50: #{tpu_custom_call.1} parent=39 // pred_check_branch
          %280 = sbr.rel (%p278) target = $region52
        $region51: #{tpu_custom_call.1} parent=39 // pred_region
          %282 = dma.done [#allocation6], 32
        $region52: #{tpu_custom_call.1} parent=39 // pred_fallthru
          _
        // Predicated region
        $region53: #{tpu_custom_call.1} parent=39 // pred_check
          %p283 = pneg %p123
        $region54: #{tpu_custom_call.1} parent=39 // pred_check_branch
          %285 = sbr.rel (%p283) target = $region56
        $region55: #{tpu_custom_call.1} parent=39 // pred_region
          %287 = dma.done [#allocation9], 2048
        $region56: #{tpu_custom_call.1} parent=39 // pred_fallthru
          _
        %p288 = pneg %p55
        %p289 = pneg %p52
        %p290 = pneg %p76
        %p291 = pneg %p73
        %p292 = pneg %p97
        %p293 = pneg %p94
        %p294 = pneg %p123
        %p295 = pneg %p120
        %p296 = scmp.lt.s32.totalorder %s26, 1
        %s297 = scalar_select %p296, %s26, 1
        %s298 = scalar_lea.vmem %s4, %s297
        %p299 = pneg %p149
        %p300 = pneg %p146
        %p301 = pneg %p177
        %p302 = pneg %p174
        %s303 = sand.u32 %s164, 1
        %s304 = scalar_lea.sflag [#allocation4], %s303
        %s305 = sand.u32 %s164, 1
        %s306 = smul.addr %s305, 256
        %s307 = scalar_lea.vmem [#allocation10], %s306
        %s308 = smul.u32 32, %s27
        %p309 = scmp.lt.s32.totalorder %s26, 1
        %s310 = scalar_select %p309, %s26, 1
        %s311 = scalar_lea.vmem %s4, %s310
        %s312 = smul.u32 32, %s27
        %v313 = vld [vmem:[#allocation2] sm:$0xff]
        %v314 = vld [vmem:[#allocation2 + $0x8] sm:$0xff]
        %v315 = vld [vmem:[#allocation2 + $0x10] sm:$0xff]
        %v316 = vld [vmem:[#allocation2 + $0x18] sm:$0xff]
        %v317 = vld [vmem:[#allocation2 + $0x20] sm:$0xff]
        %v318 = vld [vmem:[#allocation2 + $0x28] sm:$0xff]
        %v319 = vld [vmem:[#allocation2 + $0x30] sm:$0xff]
        %v320 = vld [vmem:[#allocation2 + $0x38] sm:$0xff]
        %v321 = vld [vmem:[#allocation2 + $0x40] sm:$0xff]
        %v322 = vld [vmem:[#allocation2 + $0x48] sm:$0xff]
        %v323 = vld [vmem:[#allocation2 + $0x50] sm:$0xff]
        %v324 = vld [vmem:[#allocation2 + $0x58] sm:$0xff]
        %v325 = vld [vmem:[#allocation2 + $0x60] sm:$0xff]
        %v326 = vld [vmem:[#allocation2 + $0x68] sm:$0xff]
        %v327 = vld [vmem:[#allocation2 + $0x70] sm:$0xff]
        %v328 = vld [vmem:[#allocation2 + $0x78] sm:$0xff]
        %v329 = vld [vmem:[#allocation2 + $0x80] sm:$0xff]
        %v330 = vld [vmem:[#allocation2 + $0x88] sm:$0xff]
        %v331 = vld [vmem:[#allocation2 + $0x90] sm:$0xff]
        %v332 = vld [vmem:[#allocation2 + $0x98] sm:$0xff]
        %v333 = vld [vmem:[#allocation2 + $0xa0] sm:$0xff]
        %v334 = vld [vmem:[#allocation2 + $0xa8] sm:$0xff]
        %v335 = vld [vmem:[#allocation2 + $0xb0] sm:$0xff]
        %v336 = vld [vmem:[#allocation2 + $0xb8] sm:$0xff]
        %v337 = vld [vmem:[#allocation2 + $0xc0] sm:$0xff]
        %v338 = vld [vmem:[#allocation2 + $0xc8] sm:$0xff]
        %v339 = vld [vmem:[#allocation2 + $0xd0] sm:$0xff]
        %v340 = vld [vmem:[#allocation2 + $0xd8] sm:$0xff]
        %v341 = vld [vmem:[#allocation2 + $0xe0] sm:$0xff]
        %v342 = vld [vmem:[#allocation2 + $0xe8] sm:$0xff]
        %v343 = vld [vmem:[#allocation2 + $0xf0] sm:$0xff]
        %v344 = vld [vmem:[#allocation2 + $0xf8] sm:$0xff]
        %v345 = vpack.c.bf16 %v314, %v313
        %v346 = vpack.c.bf16 %v316, %v315
        %v347 = vpack.c.bf16 %v318, %v317
        %v348 = vpack.c.bf16 %v320, %v319
        %v349 = vpack.c.bf16 %v322, %v321
        %v350 = vpack.c.bf16 %v324, %v323
        %v351 = vpack.c.bf16 %v326, %v325
        %v352 = vpack.c.bf16 %v328, %v327
        %v353 = vpack.c.bf16 %v330, %v329
        %v354 = vpack.c.bf16 %v332, %v331
        %v355 = vpack.c.bf16 %v334, %v333
        %v356 = vpack.c.bf16 %v336, %v335
        %v357 = vpack.c.bf16 %v338, %v337
        %v358 = vpack.c.bf16 %v340, %v339
        %v359 = vpack.c.bf16 %v342, %v341
        %v360 = vpack.c.bf16 %v344, %v343
        %v361 = vld [vmem:[#allocation5] sm:$0xff]
        %v362 = vld [vmem:[#allocation5 + $0x8] sm:$0xff]
        %v363 = vld [vmem:[#allocation5 + $0x10] sm:$0xff]
        %v364 = vld [vmem:[#allocation5 + $0x18] sm:$0xff]
        %v365 = vld [vmem:[#allocation5 + $0x20] sm:$0xff]
        %v366 = vld [vmem:[#allocation5 + $0x28] sm:$0xff]
        %v367 = vld [vmem:[#allocation5 + $0x30] sm:$0xff]
        %v368 = vld [vmem:[#allocation5 + $0x38] sm:$0xff]
        %v369 = vld [vmem:[#allocation5 + $0x40] sm:$0xff]
        %v370 = vld [vmem:[#allocation5 + $0x48] sm:$0xff]
        %v371 = vld [vmem:[#allocation5 + $0x50] sm:$0xff]
        %v372 = vld [vmem:[#allocation5 + $0x58] sm:$0xff]
        %v373 = vld [vmem:[#allocation5 + $0x60] sm:$0xff]
        %v374 = vld [vmem:[#allocation5 + $0x68] sm:$0xff]
        %v375 = vld [vmem:[#allocation5 + $0x70] sm:$0xff]
        %v376 = vld [vmem:[#allocation5 + $0x78] sm:$0xff]
        %v377 = vld [vmem:[#allocation7] sm:$0x3]
        %v379 = vperm.slane %v377, 0
        %v380 = vperm.slane %v377, 1
        %v399 = vunpack.c.l.b16 %v361
        %v400 = vunpack.c.h.b16 %v361
        %v401 = vunpack.c.l.b16 %v362
        %v402 = vunpack.c.h.b16 %v362
        %v403 = vunpack.c.l.b16 %v363
        %v404 = vunpack.c.h.b16 %v363
        %v405 = vunpack.c.l.b16 %v364
        %v406 = vunpack.c.h.b16 %v364
        %v407 = vunpack.c.l.b16 %v365
        %v408 = vunpack.c.h.b16 %v365
        %v409 = vunpack.c.l.b16 %v366
        %v410 = vunpack.c.h.b16 %v366
        %v411 = vunpack.c.l.b16 %v367
        %v412 = vunpack.c.h.b16 %v367
        %v413 = vunpack.c.l.b16 %v368
        %v414 = vunpack.c.h.b16 %v368
        %v415 = vunpack.c.l.b16 %v369
        %v416 = vunpack.c.h.b16 %v369
        %v417 = vunpack.c.l.b16 %v370
        %v418 = vunpack.c.h.b16 %v370
        %v419 = vunpack.c.l.b16 %v371
        %v420 = vunpack.c.h.b16 %v371
        %v421 = vunpack.c.l.b16 %v372
        %v422 = vunpack.c.h.b16 %v372
        %v423 = vunpack.c.l.b16 %v373
        %v424 = vunpack.c.h.b16 %v373
        %v425 = vunpack.c.l.b16 %v374
        %v426 = vunpack.c.h.b16 %v374
        %v427 = vunpack.c.l.b16 %v375
        %v428 = vunpack.c.h.b16 %v375
        %v429 = vunpack.c.l.b16 %v376
        %v430 = vunpack.c.h.b16 %v376
        %v431 = vpack.c.b16 %v401, %v399
        %v432 = vpack.c.b16 %v402, %v400
        %v433 = vpack.c.b16 %v405, %v403
        %v434 = vpack.c.b16 %v406, %v404
        %v435 = vpack.c.b16 %v409, %v407
        %v436 = vpack.c.b16 %v410, %v408
        %v437 = vpack.c.b16 %v413, %v411
        %v438 = vpack.c.b16 %v414, %v412
        %v439 = vpack.c.b16 %v417, %v415
        %v440 = vpack.c.b16 %v418, %v416
        %v441 = vpack.c.b16 %v421, %v419
        %v442 = vpack.c.b16 %v422, %v420
        %v443 = vpack.c.b16 %v425, %v423
        %v444 = vpack.c.b16 %v426, %v424
        %v445 = vpack.c.b16 %v429, %v427
        %v446 = vpack.c.b16 %v430, %v428
        %463 = vmatpush.bf16.msra.mxu0 %v445
        %464 = vmatpush.bf16.msra.mxu0 %v443
        %465 = vmatpush.bf16.msra.mxu0 %v441
        %466 = vmatpush.bf16.msra.mxu0 %v439
        %467 = vmatpush.bf16.msra.mxu0 %v437
        %468 = vmatpush.bf16.msra.mxu0 %v435
        %469 = vmatpush.bf16.msra.mxu0 %v433
        %470 = vmatpush.bf16.msra.mxu0 %v431
        %471 = vmatmul.bf16.gmra.mxu0 %v345
        %v472 = vpop.f32.mrf.mxu0
        %v473 = vadd.f32 %v379, %v472
        %v474 = vpop.f32.mrf.mxu0
        %v475 = vadd.f32 %v379, %v474
        %476 = vmatmul.bf16.gmra.mxu0 %v346
        %v477 = vpop.f32.mrf.mxu0
        %v478 = vadd.f32 %v379, %v477
        %v479 = vpop.f32.mrf.mxu0
        %v480 = vadd.f32 %v379, %v479
        %481 = vmatmul.bf16.gmra.mxu0 %v347
        %v482 = vpop.f32.mrf.mxu0
        %v483 = vadd.f32 %v379, %v482
        %v484 = vpop.f32.mrf.mxu0
        %v485 = vadd.f32 %v379, %v484
        %486 = vmatmul.bf16.gmra.mxu0 %v348
        %v487 = vpop.f32.mrf.mxu0
        %v488 = vadd.f32 %v379, %v487
        %v489 = vpop.f32.mrf.mxu0
        %v490 = vadd.f32 %v379, %v489
        %491 = vmatmul.bf16.gmra.mxu0 %v349
        %v492 = vpop.f32.mrf.mxu0
        %v493 = vadd.f32 %v379, %v492
        %v494 = vpop.f32.mrf.mxu0
        %v495 = vadd.f32 %v379, %v494
        %496 = vmatmul.bf16.gmra.mxu0 %v350
        %v497 = vpop.f32.mrf.mxu0
        %v498 = vadd.f32 %v379, %v497
        %v499 = vpop.f32.mrf.mxu0
        %v500 = vadd.f32 %v379, %v499
        %501 = vmatmul.bf16.gmra.mxu0 %v351
        %v502 = vpop.f32.mrf.mxu0
        %v503 = vadd.f32 %v379, %v502
        %v504 = vpop.f32.mrf.mxu0
        %v505 = vadd.f32 %v379, %v504
        %506 = vmatmul.bf16.gmra.mxu0 %v352
        %v507 = vpop.f32.mrf.mxu0
        %v508 = vadd.f32 %v379, %v507
        %v509 = vpop.f32.mrf.mxu0
        %v510 = vadd.f32 %v379, %v509
        %511 = vmatmul.bf16.gmra.mxu0 %v353
        %v512 = vpop.f32.mrf.mxu0
        %v513 = vadd.f32 %v379, %v512
        %v514 = vpop.f32.mrf.mxu0
        %v515 = vadd.f32 %v379, %v514
        %516 = vmatmul.bf16.gmra.mxu0 %v354
        %v517 = vpop.f32.mrf.mxu0
        %v518 = vadd.f32 %v379, %v517
        %v519 = vpop.f32.mrf.mxu0
        %v520 = vadd.f32 %v379, %v519
        %521 = vmatmul.bf16.gmra.mxu0 %v355
        %v522 = vpop.f32.mrf.mxu0
        %v523 = vadd.f32 %v379, %v522
        %v524 = vpop.f32.mrf.mxu0
        %v525 = vadd.f32 %v379, %v524
        %526 = vmatmul.bf16.gmra.mxu0 %v356
        %v527 = vpop.f32.mrf.mxu0
        %v528 = vadd.f32 %v379, %v527
        %v529 = vpop.f32.mrf.mxu0
        %v530 = vadd.f32 %v379, %v529
        %531 = vmatmul.bf16.gmra.mxu0 %v357
        %v532 = vpop.f32.mrf.mxu0
        %v533 = vadd.f32 %v379, %v532
        %v534 = vpop.f32.mrf.mxu0
        %v535 = vadd.f32 %v379, %v534
        %536 = vmatmul.bf16.gmra.mxu0 %v358
        %v537 = vpop.f32.mrf.mxu0
        %v538 = vadd.f32 %v379, %v537
        %v539 = vpop.f32.mrf.mxu0
        %v540 = vadd.f32 %v379, %v539
        %541 = vmatmul.bf16.gmra.mxu0 %v359
        %v542 = vpop.f32.mrf.mxu0
        %v543 = vadd.f32 %v379, %v542
        %v544 = vpop.f32.mrf.mxu0
        %v545 = vadd.f32 %v379, %v544
        %546 = vmatmul.bf16.gmra.mxu0 %v360
        %v547 = vpop.f32.mrf.mxu0
        %v548 = vadd.f32 %v379, %v547
        %v549 = vpop.f32.mrf.mxu0
        %v550 = vadd.f32 %v379, %v549
        %551 = vdwg.mxu0
        %552 = vmatpush.bf16.msra.mxu0 %v446
        %553 = vmatpush.bf16.msra.mxu0 %v444
        %554 = vmatpush.bf16.msra.mxu0 %v442
        %555 = vmatpush.bf16.msra.mxu0 %v440
        %556 = vmatpush.bf16.msra.mxu0 %v438
        %557 = vmatpush.bf16.msra.mxu0 %v436
        %558 = vmatpush.bf16.msra.mxu0 %v434
        %559 = vmatpush.bf16.msra.mxu0 %v432
        %560 = vmatmul.bf16.gmra.mxu0 %v345
        %v561 = vpop.f32.mrf.mxu0
        %v562 = vadd.f32 %v380, %v561
        %v563 = vpop.f32.mrf.mxu0
        %v564 = vadd.f32 %v380, %v563
        %565 = vmatmul.bf16.gmra.mxu0 %v346
        %v566 = vpop.f32.mrf.mxu0
        %v567 = vadd.f32 %v380, %v566
        %v568 = vpop.f32.mrf.mxu0
        %v569 = vadd.f32 %v380, %v568
        %570 = vmatmul.bf16.gmra.mxu0 %v347
        %v571 = vpop.f32.mrf.mxu0
        %v572 = vadd.f32 %v380, %v571
        %v573 = vpop.f32.mrf.mxu0
        %v574 = vadd.f32 %v380, %v573
        %575 = vmatmul.bf16.gmra.mxu0 %v348
        %v576 = vpop.f32.mrf.mxu0
        %v577 = vadd.f32 %v380, %v576
        %v578 = vpop.f32.mrf.mxu0
        %v579 = vadd.f32 %v380, %v578
        %580 = vmatmul.bf16.gmra.mxu0 %v349
        %v581 = vpop.f32.mrf.mxu0
        %v582 = vadd.f32 %v380, %v581
        %v583 = vpop.f32.mrf.mxu0
        %v584 = vadd.f32 %v380, %v583
        %585 = vmatmul.bf16.gmra.mxu0 %v350
        %v586 = vpop.f32.mrf.mxu0
        %v587 = vadd.f32 %v380, %v586
        %v588 = vpop.f32.mrf.mxu0
        %v589 = vadd.f32 %v380, %v588
        %590 = vmatmul.bf16.gmra.mxu0 %v351
        %v591 = vpop.f32.mrf.mxu0
        %v592 = vadd.f32 %v380, %v591
        %v593 = vpop.f32.mrf.mxu0
        %v594 = vadd.f32 %v380, %v593
        %595 = vmatmul.bf16.gmra.mxu0 %v352
        %v596 = vpop.f32.mrf.mxu0
        %v597 = vadd.f32 %v380, %v596
        %v598 = vpop.f32.mrf.mxu0
        %v599 = vadd.f32 %v380, %v598
        %600 = vmatmul.bf16.gmra.mxu0 %v353
        %v601 = vpop.f32.mrf.mxu0
        %v602 = vadd.f32 %v380, %v601
        %v603 = vpop.f32.mrf.mxu0
        %v604 = vadd.f32 %v380, %v603
        %605 = vmatmul.bf16.gmra.mxu0 %v354
        %v606 = vpop.f32.mrf.mxu0
        %v607 = vadd.f32 %v380, %v606
        %v608 = vpop.f32.mrf.mxu0
        %v609 = vadd.f32 %v380, %v608
        %610 = vmatmul.bf16.gmra.mxu0 %v355
        %v611 = vpop.f32.mrf.mxu0
        %v612 = vadd.f32 %v380, %v611
        %v613 = vpop.f32.mrf.mxu0
        %v614 = vadd.f32 %v380, %v613
        %615 = vmatmul.bf16.gmra.mxu0 %v356
        %v616 = vpop.f32.mrf.mxu0
        %v617 = vadd.f32 %v380, %v616
        %v618 = vpop.f32.mrf.mxu0
        %v619 = vadd.f32 %v380, %v618
        %620 = vmatmul.bf16.gmra.mxu0 %v357
        %v621 = vpop.f32.mrf.mxu0
        %v622 = vadd.f32 %v380, %v621
        %v623 = vpop.f32.mrf.mxu0
        %v624 = vadd.f32 %v380, %v623
        %625 = vmatmul.bf16.gmra.mxu0 %v358
        %v626 = vpop.f32.mrf.mxu0
        %v627 = vadd.f32 %v380, %v626
        %v628 = vpop.f32.mrf.mxu0
        %v629 = vadd.f32 %v380, %v628
        %630 = vmatmul.bf16.gmra.mxu0 %v359
        %v631 = vpop.f32.mrf.mxu0
        %v632 = vadd.f32 %v380, %v631
        %v633 = vpop.f32.mrf.mxu0
        %v634 = vadd.f32 %v380, %v633
        %635 = vmatmul.bf16.gmra.mxu0 %v360
        %v636 = vpop.f32.mrf.mxu0
        %v637 = vadd.f32 %v380, %v636
        %v638 = vpop.f32.mrf.mxu0
        %v639 = vadd.f32 %v380, %v638
        %640 = vdwg.mxu0
        %v641 = vmul.f32 %v473, 0.2
        %v642 = vmul.f32 %v562, 0.2
        %v643 = vmul.f32 %v475, 0.2
        %v644 = vmul.f32 %v564, 0.2
        %v645 = vmul.f32 %v478, 0.2
        %v646 = vmul.f32 %v567, 0.2
        %v647 = vmul.f32 %v480, 0.2
        %v648 = vmul.f32 %v569, 0.2
        %v649 = vmul.f32 %v483, 0.2
        %v650 = vmul.f32 %v572, 0.2
        %v651 = vmul.f32 %v485, 0.2
        %v652 = vmul.f32 %v574, 0.2
        %v653 = vmul.f32 %v488, 0.2
        %v654 = vmul.f32 %v577, 0.2
        %v655 = vmul.f32 %v490, 0.2
        %v656 = vmul.f32 %v579, 0.2
        %v657 = vmul.f32 %v493, 0.2
        %v658 = vmul.f32 %v582, 0.2
        %v659 = vmul.f32 %v495, 0.2
        %v660 = vmul.f32 %v584, 0.2
        %v661 = vmul.f32 %v498, 0.2
        %v662 = vmul.f32 %v587, 0.2
        %v663 = vmul.f32 %v500, 0.2
        %v664 = vmul.f32 %v589, 0.2
        %v665 = vmul.f32 %v503, 0.2
        %v666 = vmul.f32 %v592, 0.2
        %v667 = vmul.f32 %v505, 0.2
        %v668 = vmul.f32 %v594, 0.2
        %v669 = vmul.f32 %v508, 0.2
        %v670 = vmul.f32 %v597, 0.2
        %v671 = vmul.f32 %v510, 0.2
        %v672 = vmul.f32 %v599, 0.2
        %v673 = vmul.f32 %v513, 0.2
        %v674 = vmul.f32 %v602, 0.2
        %v675 = vmul.f32 %v515, 0.2
        %v676 = vmul.f32 %v604, 0.2
        %v677 = vmul.f32 %v518, 0.2
        %v678 = vmul.f32 %v607, 0.2
        %v679 = vmul.f32 %v520, 0.2
        %v680 = vmul.f32 %v609, 0.2
        %v681 = vmul.f32 %v523, 0.2
        %v682 = vmul.f32 %v612, 0.2
        %v683 = vmul.f32 %v525, 0.2
        %v684 = vmul.f32 %v614, 0.2
        %v685 = vmul.f32 %v528, 0.2
        %v686 = vmul.f32 %v617, 0.2
        %v687 = vmul.f32 %v530, 0.2
        %v688 = vmul.f32 %v619, 0.2
        %v689 = vmul.f32 %v533, 0.2
        %v690 = vmul.f32 %v622, 0.2
        %v691 = vmul.f32 %v535, 0.2
        %v692 = vmul.f32 %v624, 0.2
        %v693 = vmul.f32 %v538, 0.2
        %v694 = vmul.f32 %v627, 0.2
        %v695 = vmul.f32 %v540, 0.2
        %v696 = vmul.f32 %v629, 0.2
        %v697 = vmul.f32 %v543, 0.2
        %v698 = vmul.f32 %v632, 0.2
        %v699 = vmul.f32 %v545, 0.2
        %v700 = vmul.f32 %v634, 0.2
        %v701 = vmul.f32 %v548, 0.2
        %v702 = vmul.f32 %v637, 0.2
        %v703 = vmul.f32 %v550, 0.2
        %v704 = vmul.f32 %v639, 0.2
        %v705 = vmax.f32 %v473, %v641
        %v706 = vmax.f32 %v562, %v642
        %v707 = vmax.f32 %v475, %v643
        %v708 = vmax.f32 %v564, %v644
        %v709 = vmax.f32 %v478, %v645
        %v710 = vmax.f32 %v567, %v646
        %v711 = vmax.f32 %v480, %v647
        %v712 = vmax.f32 %v569, %v648
        %v713 = vmax.f32 %v483, %v649
        %v714 = vmax.f32 %v572, %v650
        %v715 = vmax.f32 %v485, %v651
        %v716 = vmax.f32 %v574, %v652
        %v717 = vmax.f32 %v488, %v653
        %v718 = vmax.f32 %v577, %v654
        %v719 = vmax.f32 %v490, %v655
        %v720 = vmax.f32 %v579, %v656
        %v721 = vmax.f32 %v493, %v657
        %v722 = vmax.f32 %v582, %v658
        %v723 = vmax.f32 %v495, %v659
        %v724 = vmax.f32 %v584, %v660
        %v725 = vmax.f32 %v498, %v661
        %v726 = vmax.f32 %v587, %v662
        %v727 = vmax.f32 %v500, %v663
        %v728 = vmax.f32 %v589, %v664
        %v729 = vmax.f32 %v503, %v665
        %v730 = vmax.f32 %v592, %v666
        %v731 = vmax.f32 %v505, %v667
        %v732 = vmax.f32 %v594, %v668
        %v733 = vmax.f32 %v508, %v669
        %v734 = vmax.f32 %v597, %v670
        %v735 = vmax.f32 %v510, %v671
        %v736 = vmax.f32 %v599, %v672
        %v737 = vmax.f32 %v513, %v673
        %v738 = vmax.f32 %v602, %v674
        %v739 = vmax.f32 %v515, %v675
        %v740 = vmax.f32 %v604, %v676
        %v741 = vmax.f32 %v518, %v677
        %v742 = vmax.f32 %v607, %v678
        %v743 = vmax.f32 %v520, %v679
        %v744 = vmax.f32 %v609, %v680
        %v745 = vmax.f32 %v523, %v681
        %v746 = vmax.f32 %v612, %v682
        %v747 = vmax.f32 %v525, %v683
        %v748 = vmax.f32 %v614, %v684
        %v749 = vmax.f32 %v528, %v685
        %v750 = vmax.f32 %v617, %v686
        %v751 = vmax.f32 %v530, %v687
        %v752 = vmax.f32 %v619, %v688
        %v753 = vmax.f32 %v533, %v689
        %v754 = vmax.f32 %v622, %v690
        %v755 = vmax.f32 %v535, %v691
        %v756 = vmax.f32 %v624, %v692
        %v757 = vmax.f32 %v538, %v693
        %v758 = vmax.f32 %v627, %v694
        %v759 = vmax.f32 %v540, %v695
        %v760 = vmax.f32 %v629, %v696
        %v761 = vmax.f32 %v543, %v697
        %v762 = vmax.f32 %v632, %v698
        %v763 = vmax.f32 %v545, %v699
        %v764 = vmax.f32 %v634, %v700
        %v765 = vmax.f32 %v548, %v701
        %v766 = vmax.f32 %v637, %v702
        %v767 = vmax.f32 %v550, %v703
        %v768 = vmax.f32 %v639, %v704
        %v769 = vpack.c.bf16 %v707, %v705
        %v770 = vpack.c.bf16 %v708, %v706
        %v771 = vpack.c.bf16 %v711, %v709
        %v772 = vpack.c.bf16 %v712, %v710
        %v773 = vpack.c.bf16 %v715, %v713
        %v774 = vpack.c.bf16 %v716, %v714
        %v775 = vpack.c.bf16 %v719, %v717
        %v776 = vpack.c.bf16 %v720, %v718
        %v777 = vpack.c.bf16 %v723, %v721
        %v778 = vpack.c.bf16 %v724, %v722
        %v779 = vpack.c.bf16 %v727, %v725
        %v780 = vpack.c.bf16 %v728, %v726
        %v781 = vpack.c.bf16 %v731, %v729
        %v782 = vpack.c.bf16 %v732, %v730
        %v783 = vpack.c.bf16 %v735, %v733
        %v784 = vpack.c.bf16 %v736, %v734
        %v785 = vpack.c.bf16 %v739, %v737
        %v786 = vpack.c.bf16 %v740, %v738
        %v787 = vpack.c.bf16 %v743, %v741
        %v788 = vpack.c.bf16 %v744, %v742
        %v789 = vpack.c.bf16 %v747, %v745
        %v790 = vpack.c.bf16 %v748, %v746
        %v791 = vpack.c.bf16 %v751, %v749
        %v792 = vpack.c.bf16 %v752, %v750
        %v793 = vpack.c.bf16 %v755, %v753
        %v794 = vpack.c.bf16 %v756, %v754
        %v795 = vpack.c.bf16 %v759, %v757
        %v796 = vpack.c.bf16 %v760, %v758
        %v797 = vpack.c.bf16 %v763, %v761
        %v798 = vpack.c.bf16 %v764, %v762
        %v799 = vpack.c.bf16 %v767, %v765
        %v800 = vpack.c.bf16 %v768, %v766
        %v801 = vld [vmem:[#allocation8] sm:$0xf]
        %v802 = vld [vmem:[#allocation8 + $0x4] sm:$0xf]
        %v803 = vld [vmem:[#allocation8 + $0x8] sm:$0xf]
        %v804 = vld [vmem:[#allocation8 + $0xc] sm:$0xf]
        %v805 = vld [vmem:[#allocation8 + $0x10] sm:$0xf]
        %v806 = vld [vmem:[#allocation8 + $0x14] sm:$0xf]
        %v807 = vld [vmem:[#allocation8 + $0x18] sm:$0xf]
        %v808 = vld [vmem:[#allocation8 + $0x1c] sm:$0xf]
        %v809 = vld [vmem:[#allocation8 + $0x20] sm:$0xf]
        %v810 = vld [vmem:[#allocation8 + $0x24] sm:$0xf]
        %v811 = vld [vmem:[#allocation8 + $0x28] sm:$0xf]
        %v812 = vld [vmem:[#allocation8 + $0x2c] sm:$0xf]
        %v813 = vld [vmem:[#allocation8 + $0x30] sm:$0xf]
        %v814 = vld [vmem:[#allocation8 + $0x34] sm:$0xf]
        %v815 = vld [vmem:[#allocation8 + $0x38] sm:$0xf]
        %v816 = vld [vmem:[#allocation8 + $0x3c] sm:$0xf]
        %v817 = vld [vmem:[#allocation8 + $0x40] sm:$0xf]
        %v818 = vld [vmem:[#allocation8 + $0x44] sm:$0xf]
        %v819 = vld [vmem:[#allocation8 + $0x48] sm:$0xf]
        %v820 = vld [vmem:[#allocation8 + $0x4c] sm:$0xf]
        %v821 = vld [vmem:[#allocation8 + $0x50] sm:$0xf]
        %v822 = vld [vmem:[#allocation8 + $0x54] sm:$0xf]
        %v823 = vld [vmem:[#allocation8 + $0x58] sm:$0xf]
        %v824 = vld [vmem:[#allocation8 + $0x5c] sm:$0xf]
        %v825 = vld [vmem:[#allocation8 + $0x60] sm:$0xf]
        %v826 = vld [vmem:[#allocation8 + $0x64] sm:$0xf]
        %v827 = vld [vmem:[#allocation8 + $0x68] sm:$0xf]
        %v828 = vld [vmem:[#allocation8 + $0x6c] sm:$0xf]
        %v829 = vld [vmem:[#allocation8 + $0x70] sm:$0xf]
        %v830 = vld [vmem:[#allocation8 + $0x74] sm:$0xf]
        %v831 = vld [vmem:[#allocation8 + $0x78] sm:$0xf]
        %v832 = vld [vmem:[#allocation8 + $0x7c] sm:$0xf]
        %v833 = vld [vmem:[%s311] sm:$0x1]
        %v835 = vperm.slane %v833, 0
        %v869 = vunpack.c.l.b16 %v801
        %v870 = vunpack.c.l.b16 %v802
        %v871 = vunpack.c.l.b16 %v803
        %v872 = vunpack.c.l.b16 %v804
        %v873 = vunpack.c.l.b16 %v805
        %v874 = vunpack.c.l.b16 %v806
        %v875 = vunpack.c.l.b16 %v807
        %v876 = vunpack.c.l.b16 %v808
        %v877 = vunpack.c.l.b16 %v809
        %v878 = vunpack.c.l.b16 %v810
        %v879 = vunpack.c.l.b16 %v811
        %v880 = vunpack.c.l.b16 %v812
        %v881 = vunpack.c.l.b16 %v813
        %v882 = vunpack.c.l.b16 %v814
        %v883 = vunpack.c.l.b16 %v815
        %v884 = vunpack.c.l.b16 %v816
        %v885 = vunpack.c.l.b16 %v817
        %v886 = vunpack.c.l.b16 %v818
        %v887 = vunpack.c.l.b16 %v819
        %v888 = vunpack.c.l.b16 %v820
        %v889 = vunpack.c.l.b16 %v821
        %v890 = vunpack.c.l.b16 %v822
        %v891 = vunpack.c.l.b16 %v823
        %v892 = vunpack.c.l.b16 %v824
        %v893 = vunpack.c.l.b16 %v825
        %v894 = vunpack.c.l.b16 %v826
        %v895 = vunpack.c.l.b16 %v827
        %v896 = vunpack.c.l.b16 %v828
        %v897 = vunpack.c.l.b16 %v829
        %v898 = vunpack.c.l.b16 %v830
        %v899 = vunpack.c.l.b16 %v831
        %v900 = vunpack.c.l.b16 %v832
        %v901 = vpack.c.b16 %v870, %v869
        %v902 = vpack.c.b16 %v872, %v871
        %v903 = vpack.c.b16 %v874, %v873
        %v904 = vpack.c.b16 %v876, %v875
        %v905 = vpack.c.b16 %v878, %v877
        %v906 = vpack.c.b16 %v880, %v879
        %v907 = vpack.c.b16 %v882, %v881
        %v908 = vpack.c.b16 %v884, %v883
        %v909 = vpack.c.b16 %v886, %v885
        %v910 = vpack.c.b16 %v888, %v887
        %v911 = vpack.c.b16 %v890, %v889
        %v912 = vpack.c.b16 %v892, %v891
        %v913 = vpack.c.b16 %v894, %v893
        %v914 = vpack.c.b16 %v896, %v895
        %v915 = vpack.c.b16 %v898, %v897
        %v916 = vpack.c.b16 %v900, %v899
        %933 = vmatpush.bf16.msra.mxu0 %v908
        %934 = vmatpush.bf16.msra.mxu0 %v907
        %935 = vmatpush.bf16.msra.mxu0 %v906
        %936 = vmatpush.bf16.msra.mxu0 %v905
        %937 = vmatpush.bf16.msra.mxu0 %v904
        %938 = vmatpush.bf16.msra.mxu0 %v903
        %939 = vmatpush.bf16.msra.mxu0 %v902
        %940 = vmatpush.bf16.msra.mxu0 %v901
        %941 = vmatmul.bf16.gmra.mxu0 %v769
        %v942 = vpop.f32.mrf.mxu0
        %v943 = vadd.f32 %v835, %v942
        %v944 = vpop.f32.mrf.mxu0
        %v945 = vadd.f32 %v835, %v944
        %946 = vmatmul.bf16.gmra.mxu0 %v771
        %v947 = vpop.f32.mrf.mxu0
        %v948 = vadd.f32 %v835, %v947
        %v949 = vpop.f32.mrf.mxu0
        %v950 = vadd.f32 %v835, %v949
        %951 = vmatmul.bf16.gmra.mxu0 %v773
        %v952 = vpop.f32.mrf.mxu0
        %v953 = vadd.f32 %v835, %v952
        %v954 = vpop.f32.mrf.mxu0
        %v955 = vadd.f32 %v835, %v954
        %956 = vmatmul.bf16.gmra.mxu0 %v775
        %v957 = vpop.f32.mrf.mxu0
        %v958 = vadd.f32 %v835, %v957
        %v959 = vpop.f32.mrf.mxu0
        %v960 = vadd.f32 %v835, %v959
        %961 = vmatmul.bf16.gmra.mxu0 %v777
        %v962 = vpop.f32.mrf.mxu0
        %v963 = vadd.f32 %v835, %v962
        %v964 = vpop.f32.mrf.mxu0
        %v965 = vadd.f32 %v835, %v964
        %966 = vmatmul.bf16.gmra.mxu0 %v779
        %v967 = vpop.f32.mrf.mxu0
        %v968 = vadd.f32 %v835, %v967
        %v969 = vpop.f32.mrf.mxu0
        %v970 = vadd.f32 %v835, %v969
        %971 = vmatmul.bf16.gmra.mxu0 %v781
        %v972 = vpop.f32.mrf.mxu0
        %v973 = vadd.f32 %v835, %v972
        %v974 = vpop.f32.mrf.mxu0
        %v975 = vadd.f32 %v835, %v974
        %976 = vmatmul.bf16.gmra.mxu0 %v783
        %v977 = vpop.f32.mrf.mxu0
        %v978 = vadd.f32 %v835, %v977
        %v979 = vpop.f32.mrf.mxu0
        %v980 = vadd.f32 %v835, %v979
        %981 = vmatmul.bf16.gmra.mxu0 %v785
        %v982 = vpop.f32.mrf.mxu0
        %v983 = vadd.f32 %v835, %v982
        %v984 = vpop.f32.mrf.mxu0
        %v985 = vadd.f32 %v835, %v984
        %986 = vmatmul.bf16.gmra.mxu0 %v787
        %v987 = vpop.f32.mrf.mxu0
        %v988 = vadd.f32 %v835, %v987
        %v989 = vpop.f32.mrf.mxu0
        %v990 = vadd.f32 %v835, %v989
        %991 = vmatmul.bf16.gmra.mxu0 %v789
        %v992 = vpop.f32.mrf.mxu0
        %v993 = vadd.f32 %v835, %v992
        %v994 = vpop.f32.mrf.mxu0
        %v995 = vadd.f32 %v835, %v994
        %996 = vmatmul.bf16.gmra.mxu0 %v791
        %v997 = vpop.f32.mrf.mxu0
        %v998 = vadd.f32 %v835, %v997
        %v999 = vpop.f32.mrf.mxu0
        %v1000 = vadd.f32 %v835, %v999
        %1001 = vmatmul.bf16.gmra.mxu0 %v793
        %v1002 = vpop.f32.mrf.mxu0
        %v1003 = vadd.f32 %v835, %v1002
        %v1004 = vpop.f32.mrf.mxu0
        %v1005 = vadd.f32 %v835, %v1004
        %1006 = vmatmul.bf16.gmra.mxu0 %v795
        %v1007 = vpop.f32.mrf.mxu0
        %v1008 = vadd.f32 %v835, %v1007
        %v1009 = vpop.f32.mrf.mxu0
        %v1010 = vadd.f32 %v835, %v1009
        %1011 = vmatmul.bf16.gmra.mxu0 %v797
        %v1012 = vpop.f32.mrf.mxu0
        %v1013 = vadd.f32 %v835, %v1012
        %v1014 = vpop.f32.mrf.mxu0
        %v1015 = vadd.f32 %v835, %v1014
        %1016 = vmatmul.bf16.gmra.mxu0 %v799
        %v1017 = vpop.f32.mrf.mxu0
        %v1018 = vadd.f32 %v835, %v1017
        %v1019 = vpop.f32.mrf.mxu0
        %v1020 = vadd.f32 %v835, %v1019
        %1021 = vdwg.mxu0
        %1022 = vmatpush.bf16.msra.mxu0 %v916
        %1023 = vmatpush.bf16.msra.mxu0 %v915
        %1024 = vmatpush.bf16.msra.mxu0 %v914
        %1025 = vmatpush.bf16.msra.mxu0 %v913
        %1026 = vmatpush.bf16.msra.mxu0 %v912
        %1027 = vmatpush.bf16.msra.mxu0 %v911
        %1028 = vmatpush.bf16.msra.mxu0 %v910
        %1029 = vmatpush.bf16.msra.mxu0 %v909
        %1030 = vmatmul.bf16.gmra.mxu0 %v770
        %v1031 = vpop.f32.mrf.mxu0
        %v1032 = vadd.f32 %v943, %v1031
        %v1033 = vpop.f32.mrf.mxu0
        %v1034 = vadd.f32 %v945, %v1033
        %1035 = vmatmul.bf16.gmra.mxu0 %v772
        %v1036 = vpop.f32.mrf.mxu0
        %v1037 = vadd.f32 %v948, %v1036
        %v1038 = vpop.f32.mrf.mxu0
        %v1039 = vadd.f32 %v950, %v1038
        %1040 = vmatmul.bf16.gmra.mxu0 %v774
        %v1041 = vpop.f32.mrf.mxu0
        %v1042 = vadd.f32 %v953, %v1041
        %v1043 = vpop.f32.mrf.mxu0
        %v1044 = vadd.f32 %v955, %v1043
        %1045 = vmatmul.bf16.gmra.mxu0 %v776
        %v1046 = vpop.f32.mrf.mxu0
        %v1047 = vadd.f32 %v958, %v1046
        %v1048 = vpop.f32.mrf.mxu0
        %v1049 = vadd.f32 %v960, %v1048
        %1050 = vmatmul.bf16.gmra.mxu0 %v778
        %v1051 = vpop.f32.mrf.mxu0
        %v1052 = vadd.f32 %v963, %v1051
        %v1053 = vpop.f32.mrf.mxu0
        %v1054 = vadd.f32 %v965, %v1053
        %1055 = vmatmul.bf16.gmra.mxu0 %v780
        %v1056 = vpop.f32.mrf.mxu0
        %v1057 = vadd.f32 %v968, %v1056
        %v1058 = vpop.f32.mrf.mxu0
        %v1059 = vadd.f32 %v970, %v1058
        %1060 = vmatmul.bf16.gmra.mxu0 %v782
        %v1061 = vpop.f32.mrf.mxu0
        %v1062 = vadd.f32 %v973, %v1061
        %v1063 = vpop.f32.mrf.mxu0
        %v1064 = vadd.f32 %v975, %v1063
        %1065 = vmatmul.bf16.gmra.mxu0 %v784
        %v1066 = vpop.f32.mrf.mxu0
        %v1067 = vadd.f32 %v978, %v1066
        %v1068 = vpop.f32.mrf.mxu0
        %v1069 = vadd.f32 %v980, %v1068
        %1070 = vmatmul.bf16.gmra.mxu0 %v786
        %v1071 = vpop.f32.mrf.mxu0
        %v1072 = vadd.f32 %v983, %v1071
        %v1073 = vpop.f32.mrf.mxu0
        %v1074 = vadd.f32 %v985, %v1073
        %1075 = vmatmul.bf16.gmra.mxu0 %v788
        %v1076 = vpop.f32.mrf.mxu0
        %v1077 = vadd.f32 %v988, %v1076
        %v1078 = vpop.f32.mrf.mxu0
        %v1079 = vadd.f32 %v990, %v1078
        %1080 = vmatmul.bf16.gmra.mxu0 %v790
        %v1081 = vpop.f32.mrf.mxu0
        %v1082 = vadd.f32 %v993, %v1081
        %v1083 = vpop.f32.mrf.mxu0
        %v1084 = vadd.f32 %v995, %v1083
        %1085 = vmatmul.bf16.gmra.mxu0 %v792
        %v1086 = vpop.f32.mrf.mxu0
        %v1087 = vadd.f32 %v998, %v1086
        %v1088 = vpop.f32.mrf.mxu0
        %v1089 = vadd.f32 %v1000, %v1088
        %1090 = vmatmul.bf16.gmra.mxu0 %v794
        %v1091 = vpop.f32.mrf.mxu0
        %v1092 = vadd.f32 %v1003, %v1091
        %v1093 = vpop.f32.mrf.mxu0
        %v1094 = vadd.f32 %v1005, %v1093
        %1095 = vmatmul.bf16.gmra.mxu0 %v796
        %v1096 = vpop.f32.mrf.mxu0
        %v1097 = vadd.f32 %v1008, %v1096
        %v1098 = vpop.f32.mrf.mxu0
        %v1099 = vadd.f32 %v1010, %v1098
        %1100 = vmatmul.bf16.gmra.mxu0 %v798
        %v1101 = vpop.f32.mrf.mxu0
        %v1102 = vadd.f32 %v1013, %v1101
        %v1103 = vpop.f32.mrf.mxu0
        %v1104 = vadd.f32 %v1015, %v1103
        %1105 = vmatmul.bf16.gmra.mxu0 %v800
        %v1106 = vpop.f32.mrf.mxu0
        %v1107 = vadd.f32 %v1018, %v1106
        %v1108 = vpop.f32.mrf.mxu0
        %v1109 = vadd.f32 %v1020, %v1108
        %1110 = vdwg.mxu0
        %v1111 = vmax.f32 %v1032, 0.0
        %v1112 = vmax.f32 %v1034, 0.0
        %v1113 = vmax.f32 %v1037, 0.0
        %v1114 = vmax.f32 %v1039, 0.0
        %v1115 = vmax.f32 %v1042, 0.0
        %v1116 = vmax.f32 %v1044, 0.0
        %v1117 = vmax.f32 %v1047, 0.0
        %v1118 = vmax.f32 %v1049, 0.0
        %v1119 = vmax.f32 %v1052, 0.0
        %v1120 = vmax.f32 %v1054, 0.0
        %v1121 = vmax.f32 %v1057, 0.0
        %v1122 = vmax.f32 %v1059, 0.0
        %v1123 = vmax.f32 %v1062, 0.0
        %v1124 = vmax.f32 %v1064, 0.0
        %v1125 = vmax.f32 %v1067, 0.0
        %v1126 = vmax.f32 %v1069, 0.0
        %v1127 = vmax.f32 %v1072, 0.0
        %v1128 = vmax.f32 %v1074, 0.0
        %v1129 = vmax.f32 %v1077, 0.0
        %v1130 = vmax.f32 %v1079, 0.0
        %v1131 = vmax.f32 %v1082, 0.0
        %v1132 = vmax.f32 %v1084, 0.0
        %v1133 = vmax.f32 %v1087, 0.0
        %v1134 = vmax.f32 %v1089, 0.0
        %v1135 = vmax.f32 %v1092, 0.0
        %v1136 = vmax.f32 %v1094, 0.0
        %v1137 = vmax.f32 %v1097, 0.0
        %v1138 = vmax.f32 %v1099, 0.0
        %v1139 = vmax.f32 %v1102, 0.0
        %v1140 = vmax.f32 %v1104, 0.0
        %v1141 = vmax.f32 %v1107, 0.0
        %v1142 = vmax.f32 %v1109, 0.0
        %1143 = vst [vmem:[%s307] sm:$0xff] %v1111
        %1144 = vst [vmem:[%s307 + $0x8] sm:$0xff] %v1112
        %1145 = vst [vmem:[%s307 + $0x10] sm:$0xff] %v1113
        %1146 = vst [vmem:[%s307 + $0x18] sm:$0xff] %v1114
        %1147 = vst [vmem:[%s307 + $0x20] sm:$0xff] %v1115
        %1148 = vst [vmem:[%s307 + $0x28] sm:$0xff] %v1116
        %1149 = vst [vmem:[%s307 + $0x30] sm:$0xff] %v1117
        %1150 = vst [vmem:[%s307 + $0x38] sm:$0xff] %v1118
        %1151 = vst [vmem:[%s307 + $0x40] sm:$0xff] %v1119
        %1152 = vst [vmem:[%s307 + $0x48] sm:$0xff] %v1120
        %1153 = vst [vmem:[%s307 + $0x50] sm:$0xff] %v1121
        %1154 = vst [vmem:[%s307 + $0x58] sm:$0xff] %v1122
        %1155 = vst [vmem:[%s307 + $0x60] sm:$0xff] %v1123
        %1156 = vst [vmem:[%s307 + $0x68] sm:$0xff] %v1124
        %1157 = vst [vmem:[%s307 + $0x70] sm:$0xff] %v1125
        %1158 = vst [vmem:[%s307 + $0x78] sm:$0xff] %v1126
        %1159 = vst [vmem:[%s307 + $0x80] sm:$0xff] %v1127
        %1160 = vst [vmem:[%s307 + $0x88] sm:$0xff] %v1128
        %1161 = vst [vmem:[%s307 + $0x90] sm:$0xff] %v1129
        %1162 = vst [vmem:[%s307 + $0x98] sm:$0xff] %v1130
        %1163 = vst [vmem:[%s307 + $0xa0] sm:$0xff] %v1131
        %1164 = vst [vmem:[%s307 + $0xa8] sm:$0xff] %v1132
        %1165 = vst [vmem:[%s307 + $0xb0] sm:$0xff] %v1133
        %1166 = vst [vmem:[%s307 + $0xb8] sm:$0xff] %v1134
        %1167 = vst [vmem:[%s307 + $0xc0] sm:$0xff] %v1135
        %1168 = vst [vmem:[%s307 + $0xc8] sm:$0xff] %v1136
        %1169 = vst [vmem:[%s307 + $0xd0] sm:$0xff] %v1137
        %1170 = vst [vmem:[%s307 + $0xd8] sm:$0xff] %v1138
        %1171 = vst [vmem:[%s307 + $0xe0] sm:$0xff] %v1139
        %1172 = vst [vmem:[%s307 + $0xe8] sm:$0xff] %v1140
        %1173 = vst [vmem:[%s307 + $0xf0] sm:$0xff] %v1141
        %1174 = vst [vmem:[%s307 + $0xf8] sm:$0xff] %v1142
        %s1175 = sand.u32 %s164, 1
        %s1176 = scalar_lea.sflag [#allocation4], %s1175
        %s1177 = sand.u32 %s164, 1
        %s1178 = smul.addr %s1177, 256
        %s1179 = scalar_lea.vmem [#allocation10], %s1178
        // Predicated region
        $region57: #{tpu_custom_call.1} parent=39 // pred_check
          %p1180 = pneg %p174
        $region58: #{tpu_custom_call.1} parent=39 // pred_check_branch
          %1182 = sbr.rel (%p1180) target = $region60
        $region59: #{tpu_custom_call.1} parent=39 // pred_region
          %s1183 = smul.u32 32, %s27
          %1185 = vsyncadd %s1176, 0
          %s1186 = smul.addr %s1183, 2
          %s1187 = sadd.s32 %s26, %s1186
          %s1188 = smul.addr %s1187, 8
          %s1189 = scalar_lea.hbm %s5, %s1188
          %s1190 = sshll.u32 %s1179, 4
          %s1191 = int_to_ptr.vmem [resolvable:$true] %s1190
          %s1192 = sshll.u32 %s1189, 4
          %s1193 = int_to_ptr.hbm [resolvable:$true] %s1192
          %1198 = dma.vmem_to_hbm [thread:$0]  %s1191, 4096, %s1193, %s1176, 128, 256, 8
        $region60: #{tpu_custom_call.1} parent=39 // pred_fallthru
          _
      $region40: #{tpu_custom_call.1} parent=5 // pred_fallthru
        _
      %p1199 = scmp.le.s32.totalorder 2, %s17
      // Predicated region
      $region61: #{tpu_custom_call.1} parent=5 // pred_check
        %p1200 = pneg %p1199
      $region62: #{tpu_custom_call.1} parent=5 // pred_check_branch
        %1202 = sbr.rel (%p1200) target = $region64
      $region63: #{tpu_custom_call.1} parent=5 // pred_region
        %s1203 = ssub.s32 %s17, 2
        // Predicated region
        $region65: #{tpu_custom_call.1} parent=63 // pred_check
          %p1204 = pneg %p180
        $region66: #{tpu_custom_call.1} parent=63 // pred_check_branch
          %1206 = sbr.rel (%p1204) target = $region68
        $region67: #{tpu_custom_call.1} parent=63 // pred_region
          %s1207 = sand.u32 %s165, 1
          %s1208 = scalar_lea.sflag [#allocation4], %s1207
          %s1209 = sand.u32 %s165, 1
          %s1210 = smul.addr %s1209, 256
          %s1211 = scalar_lea.vmem [#allocation10], %s1210
          %1213 = dma.done %s1208, 4096
        $region68: #{tpu_custom_call.1} parent=63 // pred_fallthru
          _
      $region64: #{tpu_custom_call.1} parent=5 // pred_fallthru
        _
    $region6: #{tpu_custom_call.1} parent=1 // loop_footer
      %s21 = sadd.s32 1, %s17
    $region7: #{tpu_custom_call.1} parent=1 // loop_footer_branch
      %16 = sbr.rel target = $region3
    $region8: #{tpu_custom_call.1} parent=1 // loop_exit
      _
    %1214 = vsyncpa [#allocation3], 1
    %s1215 = scalar_lea.sflag [#allocation3], 1
    %1216 = vsyncpa %s1215, 1
    %1217 = vsyncpa [#allocation6], 1
    %1218 = vsyncpa [#allocation9], 1
    %1219 = vsyncpa [#allocation4], 1
    %s1220 = scalar_lea.sflag [#allocation4], 1
    %1221 = vsyncpa %s1220, 1

</llo_original>
